<compile_context>
chip_gen: v7x
topology: tpu7x:2x2x1
jax: 0.10.0
libtpu: 0.0.40
codegen_flags: <defaults>
</compile_context>

<pallas_src>
import jax
import jax.numpy as jnp
from jax import lax
from jax.experimental import pallas as pl
from jax.experimental.pallas import tpu as pltpu


def _make_basic_block_kernel(H):
    """Builds the kernel for a fixed per-image height H (closure constant)."""

    def kernel(x_ref, w1_ref, s1_ref, b1_ref, w2_ref, s2_ref, b2_ref, out_ref):
        """One grid step = a block of nb images, flattened to (nb*H, W*C).

        x_ref  : (ROWS, W*Cin)       f32  ROWS = nb*H, (W, C) flattened in lanes
        w1_ref : (3*W*Cin, W*Cout)   bf16 block-banded conv1 weights
        s1_ref : (1, W*Cout)         f32  folded BN1 scale (per-channel, tiled over W)
        b1_ref : (1, W*Cout)         f32  folded BN1 bias
        w2_ref : (3*W*Cout, W*Cout)  bf16 block-banded conv2 weights
        s2_ref : (1, W*Cout)         f32  folded BN2 scale
        b2_ref : (1, W*Cout)         f32  folded BN2 bias
        out_ref: (ROWS, W*Cout)      f32  lane-dense output
        """
        ROWS = x_ref.shape[0]
        x = x_ref[...]                                    # (ROWS, W*Cin) f32

        # Per-row masks zeroing the ky = +-1 taps at interior image boundaries
        # (row index multiple of H); the block's own edges are handled by the
        # zero-row concat below.  Hoisted out of both convs.
        row_in_img = lax.broadcasted_iota(jnp.int32, (ROWS, 1), 0) % H
        not_first = row_in_img != 0
        not_last = row_in_img != (H - 1)

        def conv3x3_banded(a, w_ref):
            # a: (ROWS, WC) f32.  ky taps = 3 row-shifted copies concatenated
            # along the lane axis; kx taps + width-wise zero padding live
            # inside the banded weight.  One bf16 MXU matmul, f32 accumulation.
            wc = a.shape[1]
            a = a.astype(w_ref.dtype)                     # bf16 matmul operand
            zrow = jnp.zeros((1, wc), a.dtype)
            zero = jnp.zeros((), a.dtype)
            up = jnp.where(not_first,
                           jnp.concatenate([zrow, a[:ROWS - 1, :]], axis=0),
                           zero)                          # input row h-1
            down = jnp.where(not_last,
                             jnp.concatenate([a[1:, :], zrow], axis=0),
                             zero)                        # input row h+1
            acat = jnp.concatenate([up, a, down], axis=1)  # (ROWS, 3*WC)
            return jnp.dot(acat, w_ref[...],
                           preferred_element_type=jnp.float32)

        # conv1 -> BN1 -> ReLU     (epilogue kept in f32)
        out1 = jnp.maximum(
            conv3x3_banded(x, w1_ref) * s1_ref[...] + b1_ref[...], 0.0)
        # conv2 -> BN2 -> + residual -> ReLU
        out2 = conv3x3_banded(out1, w2_ref) * s2_ref[...] + b2_ref[...]
        out_ref[...] = jnp.maximum(out2 + x, 0.0)

    return kernel


def _build_banded_weight(w_oihw, W, dtype):
    """PyTorch (Cout, Cin, 3, 3) conv weight -> (3*W*Cin, W*Cout) banded matrix.

    Row index = (ky, w_in, cin), col index = (w_out, cout).  The three kx taps
    sit on block diagonals; columns whose tap would read outside [0, W) are
    left zero, which implements the width-wise padding=1.
    """
    w = jnp.asarray(w_oihw, jnp.float32)                  # (Cout, Cin, 3, 3)
    Cout, Cin = w.shape[0], w.shape[1]
    wt = jnp.transpose(w, (2, 3, 1, 0))                   # (ky, kx, Cin, Cout)
    B = jnp.zeros((3, W, Cin, W, Cout), jnp.float32)
    for kx in range(3):
        band = jnp.eye(W, k=1 - kx, dtype=jnp.float32)    # [w_in, w_out]
        B = B + band[None, :, None, :, None] * wt[:, kx][:, None, :, None, :]
    return B.reshape(3 * W * Cin, W * Cout).astype(dtype)


def _pick_images_per_block(N, H, W, Cin, Cout):
    """Largest divisor nb of N such that the block keeps the (8,128) sublane
    constraint, fits comfortably in VMEM, and nb*H stays a sensible MXU M."""
    lanes = max(W * Cin, W * Cout)
    valid = []
    for nb in range(1, N + 1):
        if N % nb:
            continue
        rows = nb * H
        if rows % 8 != 0 and nb != N:   # block leading dim must be 8-aligned
            continue
        est = (2 * rows * (W * Cin + W * Cout) * 4   # double-buffered x/out (f32)
               + rows * 3 * lanes * 2                # banded bf16 matmul LHS
               + 2 * rows * W * Cout * 4)            # f32 intermediates
        if rows <= 512 and est <= 8 * 1024 * 1024:
            valid.append(nb)
    return max(valid) if valid else 1


def basic_block_forward(x_nchw, params, eps=1e-5, matmul_dtype=jnp.bfloat16,
                        images_per_block=None):
    """Forward pass of BasicBlock (stride=1, no downsample). NCHW in/out."""
    N, Cin, H, W = x_nchw.shape
    Cout = params["conv1_w"].shape[0]
    assert params["conv1_w"].shape[1] == Cin
    assert Cin == Cout, "no-downsample BasicBlock requires inplanes == planes"

    nb = (images_per_block if images_per_block is not None
          else _pick_images_per_block(N, H, W, Cin, Cout))
    assert N % nb == 0

    # NCHW -> NHWC -> (N*H, W*C): free layout plumbing, (W, C) contiguous in
    # the lane dim (W*C = 128 at the test shape -> lane-dense everywhere).
    x = jnp.transpose(x_nchw, (0, 2, 3, 1)).astype(jnp.float32)
    x_flat = x.reshape(N * H, W * Cin)

    w1 = _build_banded_weight(params["conv1_w"], W, matmul_dtype)
    w2 = _build_banded_weight(params["conv2_w"], W, matmul_dtype)

    def fold_bn(gamma, beta, mean, var):
        scale = gamma / jnp.sqrt(var + eps)
        bias = beta - mean * scale
        # per-channel -> per-(w, c) lane, so it broadcasts over the rows.
        return (jnp.tile(scale, (W,)).reshape(1, W * Cout).astype(jnp.float32),
                jnp.tile(bias, (W,)).reshape(1, W * Cout).astype(jnp.float32))

    s1, b1 = fold_bn(params["bn1_gamma"], params["bn1_beta"],
                     params["bn1_mean"], params["bn1_var"])
    s2, b2 = fold_bn(params["bn2_gamma"], params["bn2_beta"],
                     params["bn2_mean"], params["bn2_var"])

    rows_per_block = nb * H
    kernel = _make_basic_block_kernel(H)

    out_flat = pl.pallas_call(
        kernel,
        out_shape=jax.ShapeDtypeStruct((N * H, W * Cout), jnp.float32),
        grid_spec=pltpu.PrefetchScalarGridSpec(
            num_scalar_prefetch=0,
            grid=(N // nb,),
            in_specs=[
                pl.BlockSpec((rows_per_block, W * Cin), lambda b: (b, 0)),
                pl.BlockSpec((3 * W * Cin, W * Cout), lambda b: (0, 0)),
                pl.BlockSpec((1, W * Cout), lambda b: (0, 0)),
                pl.BlockSpec((1, W * Cout), lambda b: (0, 0)),
                pl.BlockSpec((3 * W * Cout, W * Cout), lambda b: (0, 0)),
                pl.BlockSpec((1, W * Cout), lambda b: (0, 0)),
                pl.BlockSpec((1, W * Cout), lambda b: (0, 0)),
            ],
            out_specs=pl.BlockSpec((rows_per_block, W * Cout),
                                   lambda b: (b, 0)),
        ),
        compiler_params=pltpu.CompilerParams(
            dimension_semantics=("parallel",),     # megacore sharding if grid > 1
            vmem_limit_bytes=32 * 1024 * 1024),
    )(x_flat, w1, s1, b1, w2, s2, b2)

    # (N*H, W*Cout) -> NCHW
    return jnp.transpose(out_flat.reshape(N, H, W, Cout), (0, 3, 1, 2))


def reference_forward(x_nchw, params, eps=1e-5, matmul_dtype=jnp.float32):
    """Pure-JAX (lax.conv) reference. matmul_dtype=bfloat16 mirrors the kernel's
    bf16 MXU operands (f32 accumulation, f32 BN/ReLU epilogue)."""
    def conv(x, w):
        return lax.conv_general_dilated(
            x.astype(matmul_dtype), w.astype(matmul_dtype),
            window_strides=(1, 1), padding=((1, 1), (1, 1)),
            dimension_numbers=("NCHW", "OIHW", "NCHW"),
            preferred_element_type=jnp.float32)

    def bn(x, g, b, m, v):
        g = g[None, :, None, None]; b = b[None, :, None, None]
        m = m[None, :, None, None]; v = v[None, :, None, None]
        return (x - m) / jnp.sqrt(v + eps) * g + b

    x_f32 = x_nchw.astype(jnp.float32)
    out = conv(x_f32, params["conv1_w"])
    out = jax.nn.relu(bn(out, params["bn1_gamma"], params["bn1_beta"],
                         params["bn1_mean"], params["bn1_var"]))
    out = conv(out, params["conv2_w"])
    out = bn(out, params["bn2_gamma"], params["bn2_beta"],
             params["bn2_mean"], params["bn2_var"])
    return jax.nn.relu(out + x_f32)


def init_params(key, inplanes, planes):
    ks = jax.random.split(key, 10)
    return {
        "conv1_w": 0.1 * jax.random.normal(ks[0], (planes, inplanes, 3, 3), jnp.float32),
        "conv2_w": 0.1 * jax.random.normal(ks[1], (planes, planes, 3, 3), jnp.float32),
        "bn1_gamma": 1.0 + 0.1 * jax.random.normal(ks[2], (planes,), jnp.float32),
        "bn1_beta": 0.1 * jax.random.normal(ks[3], (planes,), jnp.float32),
        "bn1_mean": 0.1 * jax.random.normal(ks[4], (planes,), jnp.float32),
        "bn1_var": jax.random.uniform(ks[5], (planes,), jnp.float32, 0.5, 1.5),
        "bn2_gamma": 1.0 + 0.1 * jax.random.normal(ks[6], (planes,), jnp.float32),
        "bn2_beta": 0.1 * jax.random.normal(ks[7], (planes,), jnp.float32),
        "bn2_mean": 0.1 * jax.random.normal(ks[8], (planes,), jnp.float32),
        "bn2_var": jax.random.uniform(ks[9], (planes,), jnp.float32, 0.5, 1.5),
    }


if __name__ == "__main__":
    key = jax.random.PRNGKey(0)
    k_x, k_p = jax.random.split(key)

    N, C, H, W = 2, 8, 16, 16            # inplanes = planes = 8 -> W*C = 128 lanes
    x = jax.random.normal(k_x, (N, C, H, W), jnp.float32)
    params = init_params(k_p, inplanes=C, planes=C)

    out = jax.block_until_ready(basic_block_forward(x, params))
    assert out.shape == (N, C, H, W)

    # Structural check: reference with identical bf16 matmul operands.
    ref_bf16 = jax.block_until_ready(
        reference_forward(x, params, matmul_dtype=jnp.bfloat16))
    assert jnp.allclose(out, ref_bf16, atol=5e-3, rtol=5e-3), \
        "mismatch vs bf16-matmul JAX reference"

    # Sanity check vs the pure-f32 reference (difference = bf16 operand rounding).
    ref_f32 = jax.block_until_ready(reference_forward(x, params))
    assert jnp.allclose(out, ref_f32, atol=5e-2, rtol=5e-2), \
        "mismatch vs f32 JAX reference"

    print("KERNEL_OK")
</pallas_src>

<mosaic_0001>
module attributes {stable_mosaic.version = 11 : i64} {
  func.func @kernel(%arg0: i32, %arg1: memref<32x128xf32, #tpu.memory_space<vmem>>, %arg2: memref<384x128xbf16, #tpu.memory_space<vmem>>, %arg3: memref<1x128xf32, #tpu.memory_space<vmem>>, %arg4: memref<1x128xf32, #tpu.memory_space<vmem>>, %arg5: memref<384x128xbf16, #tpu.memory_space<vmem>>, %arg6: memref<1x128xf32, #tpu.memory_space<vmem>>, %arg7: memref<1x128xf32, #tpu.memory_space<vmem>>, %arg8: memref<32x128xf32, #tpu.memory_space<vmem>>) attributes {dimension_semantics = [#tpu.dimension_semantics<parallel>], iteration_bounds = array<i64: 1>, scalar_prefetch = 0 : i64, scratch_operands = 0 : i64, tpu.core_type = #tpu.core_type<tc>, window_params = [{transform_indices = @transform_0, window_bounds = array<i64: 32, 128>}, {pipeline_mode = #tpu.pipeline_mode<synchronous>, transform_indices = @transform_1, window_bounds = array<i64: 384, 128>}, {pipeline_mode = #tpu.pipeline_mode<synchronous>, transform_indices = @transform_2, window_bounds = array<i64: 1, 128>}, {pipeline_mode = #tpu.pipeline_mode<synchronous>, transform_indices = @transform_3, window_bounds = array<i64: 1, 128>}, {pipeline_mode = #tpu.pipeline_mode<synchronous>, transform_indices = @transform_4, window_bounds = array<i64: 384, 128>}, {pipeline_mode = #tpu.pipeline_mode<synchronous>, transform_indices = @transform_5, window_bounds = array<i64: 1, 128>}, {pipeline_mode = #tpu.pipeline_mode<synchronous>, transform_indices = @transform_6, window_bounds = array<i64: 1, 128>}, {transform_indices = @transform_7, window_bounds = array<i64: 32, 128>}]} {
    %c0 = arith.constant 0 : index
    %c0_0 = arith.constant 0 : index
    %0 = vector.load %arg1[%c0, %c0_0] : memref<32x128xf32, #tpu.memory_space<vmem>>, vector<32x128xf32>
    %1 = tpu.iota {dimensions = array<i32: 0>} : vector<32x1xi32>
    %c16_i32 = arith.constant 16 : i32
    %c0_i32 = arith.constant 0 : i32
    %2 = arith.cmpi eq, %c16_i32, %c0_i32 : i32
    %c1_i32 = arith.constant 1 : i32
    %3 = arith.select %2, %c1_i32, %c16_i32 : i32
    %4 = vector.broadcast %3 : i32 to vector<32x1xi32>
    %5 = arith.remsi %1, %4 : vector<32x1xi32>
    %c0_i32_1 = arith.constant 0 : i32
    %6 = vector.broadcast %c0_i32_1 : i32 to vector<32x1xi32>
    %7 = arith.cmpi ne, %5, %6 : vector<32x1xi32>
    %c0_i32_2 = arith.constant 0 : i32
    %8 = vector.broadcast %c0_i32_2 : i32 to vector<32x1xi32>
    %9 = arith.cmpi slt, %5, %8 : vector<32x1xi32>
    %c0_i32_3 = arith.constant 0 : i32
    %10 = arith.cmpi slt, %3, %c0_i32_3 : i32
    %11 = vector.broadcast %10 : i1 to vector<32x1xi1>
    %12 = vector.broadcast %11 : vector<32x1xi1> to vector<32x1xi1>
    %13 = arith.xori %9, %12 : vector<32x1xi1>
    %14 = arith.andi %13, %7 : vector<32x1xi1>
    %15 = vector.broadcast %3 : i32 to vector<32x1xi32>
    %16 = arith.addi %5, %15 : vector<32x1xi32>
    %17 = arith.select %14, %16, %5 : vector<32x1xi1>, vector<32x1xi32>
    %c0_i32_4 = arith.constant 0 : i32
    %18 = vector.broadcast %c0_i32_4 : i32 to vector<32x1xi32>
    %19 = arith.cmpi ne, %17, %18 : vector<32x1xi32>
    %c15_i32 = arith.constant 15 : i32
    %20 = vector.broadcast %c15_i32 : i32 to vector<32x1xi32>
    %21 = arith.cmpi ne, %17, %20 : vector<32x1xi32>
    %22 = arith.truncf %0 : vector<32x128xf32> to vector<32x128xbf16>
    %cst = arith.constant 0.000000e+00 : bf16
    %23 = vector.broadcast %cst : bf16 to vector<1x128xbf16>
    %24 = vector.extract_strided_slice %22 {offsets = [0, 0], sizes = [31, 128], strides = [1, 1]} : vector<32x128xbf16> to vector<31x128xbf16>
    %25 = tpu.concatenate %23, %24 in 0 : vector<1x128xbf16>, vector<31x128xbf16> -> vector<32x128xbf16>
    %cst_5 = arith.constant 0.000000e+00 : bf16
    %26 = vector.shape_cast %19 : vector<32x1xi1> to vector<32x1xi1>
    %27 = vector.broadcast %26 : vector<32x1xi1> to vector<32x128xi1>
    %28 = vector.broadcast %cst_5 : bf16 to vector<32x128xbf16>
    %29 = arith.select %27, %25, %28 : vector<32x128xi1>, vector<32x128xbf16>
    %30 = vector.extract_strided_slice %22 {offsets = [1, 0], sizes = [31, 128], strides = [1, 1]} : vector<32x128xbf16> to vector<31x128xbf16>
    %31 = tpu.concatenate %30, %23 in 0 : vector<31x128xbf16>, vector<1x128xbf16> -> vector<32x128xbf16>
    %cst_6 = arith.constant 0.000000e+00 : bf16
    %32 = vector.shape_cast %21 : vector<32x1xi1> to vector<32x1xi1>
    %33 = vector.broadcast %32 : vector<32x1xi1> to vector<32x128xi1>
    %34 = vector.broadcast %cst_6 : bf16 to vector<32x128xbf16>
    %35 = arith.select %33, %31, %34 : vector<32x128xi1>, vector<32x128xbf16>
    %36 = tpu.concatenate %29, %22, %35 in 1 : vector<32x128xbf16>, vector<32x128xbf16>, vector<32x128xbf16> -> vector<32x384xbf16>
    %c0_7 = arith.constant 0 : index
    %c0_8 = arith.constant 0 : index
    %37 = vector.load %arg2[%c0_7, %c0_8] : memref<384x128xbf16, #tpu.memory_space<vmem>>, vector<384x128xbf16>
    %cst_9 = arith.constant dense<0.000000e+00> : vector<32x128xf32>
    %38 = tpu.matmul %36, %37, %cst_9 {dimension_numbers = #tpu.dot_dimension_numbers<[1], [0], [0], [1], [0, 0, 1, 1], [], []>} : vector<32x384xbf16>, vector<384x128xbf16>, vector<32x128xf32> -> vector<32x128xf32>
    %c0_10 = arith.constant 0 : index
    %c0_11 = arith.constant 0 : index
    %39 = vector.load %arg3[%c0_10, %c0_11] : memref<1x128xf32, #tpu.memory_space<vmem>>, vector<1x128xf32>
    %40 = vector.broadcast %39 : vector<1x128xf32> to vector<32x128xf32>
    %41 = arith.mulf %38, %40 : vector<32x128xf32>
    %c0_12 = arith.constant 0 : index
    %c0_13 = arith.constant 0 : index
    %42 = vector.load %arg4[%c0_12, %c0_13] : memref<1x128xf32, #tpu.memory_space<vmem>>, vector<1x128xf32>
    %43 = vector.broadcast %42 : vector<1x128xf32> to vector<32x128xf32>
    %44 = arith.addf %41, %43 : vector<32x128xf32>
    %cst_14 = arith.constant 0.000000e+00 : f32
    %45 = vector.broadcast %cst_14 : f32 to vector<32x128xf32>
    %46 = arith.maximumf %44, %45 : vector<32x128xf32>
    %47 = arith.truncf %46 : vector<32x128xf32> to vector<32x128xbf16>
    %cst_15 = arith.constant 0.000000e+00 : bf16
    %48 = vector.broadcast %cst_15 : bf16 to vector<1x128xbf16>
    %49 = vector.extract_strided_slice %47 {offsets = [0, 0], sizes = [31, 128], strides = [1, 1]} : vector<32x128xbf16> to vector<31x128xbf16>
    %50 = tpu.concatenate %48, %49 in 0 : vector<1x128xbf16>, vector<31x128xbf16> -> vector<32x128xbf16>
    %cst_16 = arith.constant 0.000000e+00 : bf16
    %51 = vector.shape_cast %19 : vector<32x1xi1> to vector<32x1xi1>
    %52 = vector.broadcast %51 : vector<32x1xi1> to vector<32x128xi1>
    %53 = vector.broadcast %cst_16 : bf16 to vector<32x128xbf16>
    %54 = arith.select %52, %50, %53 : vector<32x128xi1>, vector<32x128xbf16>
    %55 = vector.extract_strided_slice %47 {offsets = [1, 0], sizes = [31, 128], strides = [1, 1]} : vector<32x128xbf16> to vector<31x128xbf16>
    %56 = tpu.concatenate %55, %48 in 0 : vector<31x128xbf16>, vector<1x128xbf16> -> vector<32x128xbf16>
    %cst_17 = arith.constant 0.000000e+00 : bf16
    %57 = vector.shape_cast %21 : vector<32x1xi1> to vector<32x1xi1>
    %58 = vector.broadcast %57 : vector<32x1xi1> to vector<32x128xi1>
    %59 = vector.broadcast %cst_17 : bf16 to vector<32x128xbf16>
    %60 = arith.select %58, %56, %59 : vector<32x128xi1>, vector<32x128xbf16>
    %61 = tpu.concatenate %54, %47, %60 in 1 : vector<32x128xbf16>, vector<32x128xbf16>, vector<32x128xbf16> -> vector<32x384xbf16>
    %c0_18 = arith.constant 0 : index
    %c0_19 = arith.constant 0 : index
    %62 = vector.load %arg5[%c0_18, %c0_19] : memref<384x128xbf16, #tpu.memory_space<vmem>>, vector<384x128xbf16>
    %cst_20 = arith.constant dense<0.000000e+00> : vector<32x128xf32>
    %63 = tpu.matmul %61, %62, %cst_20 {dimension_numbers = #tpu.dot_dimension_numbers<[1], [0], [0], [1], [0, 0, 1, 1], [], []>} : vector<32x384xbf16>, vector<384x128xbf16>, vector<32x128xf32> -> vector<32x128xf32>
    %c0_21 = arith.constant 0 : index
    %c0_22 = arith.constant 0 : index
    %64 = vector.load %arg6[%c0_21, %c0_22] : memref<1x128xf32, #tpu.memory_space<vmem>>, vector<1x128xf32>
    %65 = vector.broadcast %64 : vector<1x128xf32> to vector<32x128xf32>
    %66 = arith.mulf %63, %65 : vector<32x128xf32>
    %c0_23 = arith.constant 0 : index
    %c0_24 = arith.constant 0 : index
    %67 = vector.load %arg7[%c0_23, %c0_24] : memref<1x128xf32, #tpu.memory_space<vmem>>, vector<1x128xf32>
    %68 = vector.broadcast %67 : vector<1x128xf32> to vector<32x128xf32>
    %69 = arith.addf %66, %68 : vector<32x128xf32>
    %70 = arith.addf %69, %0 : vector<32x128xf32>
    %cst_25 = arith.constant 0.000000e+00 : f32
    %71 = vector.broadcast %cst_25 : f32 to vector<32x128xf32>
    %72 = arith.maximumf %70, %71 : vector<32x128xf32>
    %c0_26 = arith.constant 0 : index
    %c0_27 = arith.constant 0 : index
    %73 = vector.load %arg8[%c0_26, %c0_27] : memref<32x128xf32, #tpu.memory_space<vmem>>, vector<32x128xf32>
    tpu.vector_store %arg8[%c0_26, %c0_27], %72 {strides = array<i32>} : memref<32x128xf32, #tpu.memory_space<vmem>>, vector<32x128xf32>,
    return
  }
  func.func @transform_0(%arg0: i32) -> (i32, i32) {
    %c0_i32 = arith.constant 0 : i32
    %c0_i32_0 = arith.constant 0 : i32
    return %arg0, %c0_i32 : i32, i32
  }
  func.func @transform_1(%arg0: i32) -> (i32, i32) {
    %c0_i32 = arith.constant 0 : i32
    %c0_i32_0 = arith.constant 0 : i32
    %c0_i32_1 = arith.constant 0 : i32
    return %c0_i32, %c0_i32_0 : i32, i32
  }
  func.func @transform_2(%arg0: i32) -> (i32, i32) {
    %c0_i32 = arith.constant 0 : i32
    %c0_i32_0 = arith.constant 0 : i32
    %c0_i32_1 = arith.constant 0 : i32
    return %c0_i32, %c0_i32_0 : i32, i32
  }
  func.func @transform_3(%arg0: i32) -> (i32, i32) {
    %c0_i32 = arith.constant 0 : i32
    %c0_i32_0 = arith.constant 0 : i32
    %c0_i32_1 = arith.constant 0 : i32
    return %c0_i32, %c0_i32_0 : i32, i32
  }
  func.func @transform_4(%arg0: i32) -> (i32, i32) {
    %c0_i32 = arith.constant 0 : i32
    %c0_i32_0 = arith.constant 0 : i32
    %c0_i32_1 = arith.constant 0 : i32
    return %c0_i32, %c0_i32_0 : i32, i32
  }
  func.func @transform_5(%arg0: i32) -> (i32, i32) {
    %c0_i32 = arith.constant 0 : i32
    %c0_i32_0 = arith.constant 0 : i32
    %c0_i32_1 = arith.constant 0 : i32
    return %c0_i32, %c0_i32_0 : i32, i32
  }
  func.func @transform_6(%arg0: i32) -> (i32, i32) {
    %c0_i32 = arith.constant 0 : i32
    %c0_i32_0 = arith.constant 0 : i32
    %c0_i32_1 = arith.constant 0 : i32
    return %c0_i32, %c0_i32_0 : i32, i32
  }
  func.func @transform_7(%arg0: i32) -> (i32, i32) {
    %c0_i32 = arith.constant 0 : i32
    %c0_i32_0 = arith.constant 0 : i32
    return %arg0, %c0_i32 : i32, i32
  }
}

</mosaic_0001>

<llo_original>
// kernel: tpu_custom_call.1
$region0: #{tpu_custom_call.1}
  #allocation0 [shape = 'u32[]', space=smem, size = 0x4, offset = 0x4, fixed_abs, tag = 'smem constant byte address 0x4 - core index']
  #allocation1 [shape = 'u32[144,128]{1,0:T(1,128)}', space=vmem, size = 0x12000, scoped, tag = 'internal scratch']
  %s0 = inlined_call_operand.hbm [shape: f32[32,128], index: 0, kind: input, shape index: {}]
  %s1 = inlined_call_operand.hbm [shape: bf16[384,128], index: 1, kind: input, shape index: {}]
  %s2 = inlined_call_operand.vmem [shape: f32[1,128], index: 2, kind: input, shape index: {}]
  %s3 = inlined_call_operand.vmem [shape: f32[1,128], index: 3, kind: input, shape index: {}]
  %s4 = inlined_call_operand.hbm [shape: bf16[384,128], index: 4, kind: input, shape index: {}]
  %s5 = inlined_call_operand.vmem [shape: f32[1,128], index: 5, kind: input, shape index: {}]
  %s6 = inlined_call_operand.vmem [shape: f32[1,128], index: 6, kind: input, shape index: {}]
  %s7 = inlined_call_operand.hbm [shape: f32[32,128], index: 7, kind: output, shape index: {}]
  %s8 = sld [smem:[#allocation0]]
  $region50: #{tpu_custom_call.1} parent=0
    _
  %s10 = ssub.s32 1, %s8
  %s11 = scalar_select 0, %s10, %s8
  $region1: #{tpu_custom_call.1} parent=0
    #allocation2 [shape = 'u8[16384]{0}', space=vmem, size = 0x4000, scoped, tag = 'input window, operand 0, single buffered']
    #allocation3 [shape = 's32[1]{0}', space=sflag, size = 0x4, scoped, tag = 'scoped memory for tpu_custom_call.1']
    #allocation4 [shape = 's32[1]{0}', space=sflag, size = 0x4, scoped, tag = 'scoped memory for tpu_custom_call.1']
    #allocation5 [shape = 'u8[98304]{0}', space=vmem, size = 0x18000, scoped, tag = 'input window, operand 1, single buffered']
    #allocation6 [shape = 's32[1]{0}', space=sflag, size = 0x4, scoped, tag = 'scoped memory for tpu_custom_call.1']
    #allocation7 [shape = 'u8[98304]{0}', space=vmem, size = 0x18000, scoped, tag = 'input window, operand 4, single buffered']
    #allocation8 [shape = 'u8[16384]{0}', space=vmem, size = 0x4000, scoped, tag = 'output window, operand 0, single buffered']
    %12 = vsyncpa [#allocation3], 0
    %13 = vsyncpa [#allocation6], 0
    %14 = vsyncpa [#allocation4], 0
    // Predicated region
    $region2: #{tpu_custom_call.1} parent=1 // pred_check
      _
    $region3: #{tpu_custom_call.1} parent=1 // pred_check_branch
      %16 = sbr.rel (0) target = $region5
    $region4: #{tpu_custom_call.1} parent=1 // pred_region
      %s18 = ssub.s32 512, 512
      %19 = vsyncadd [#allocation3], %s18
      %s20 = sshll.u32 [#allocation2], 4
      %s21 = int_to_ptr.vmem [resolvable:$true] %s20
      %26 = dma.hbm_to_vmem [thread:$0]  %s0, 512, %s21, [#allocation3], 128, 128, 8
    $region5: #{tpu_custom_call.1} parent=1 // pred_fallthru
      _
    // Predicated region
    $region6: #{tpu_custom_call.1} parent=1 // pred_check
      _
    $region7: #{tpu_custom_call.1} parent=1 // pred_check_branch
      %28 = sbr.rel (0) target = $region9
    $region8: #{tpu_custom_call.1} parent=1 // pred_region
      %s30 = ssub.s32 3072, 3072
      %31 = vsyncadd [#allocation6], %s30
      %s32 = sshll.u32 [#allocation5], 4
      %s33 = int_to_ptr.vmem [resolvable:$true] %s32
      %38 = dma.hbm_to_vmem [thread:$0]  %s1, 3072, %s33, [#allocation6], 64, 64, 4
    $region9: #{tpu_custom_call.1} parent=1 // pred_fallthru
      _
    // Predicated region
    $region10: #{tpu_custom_call.1} parent=1 // pred_check
      _
    $region11: #{tpu_custom_call.1} parent=1 // pred_check_branch
      %40 = sbr.rel (0) target = $region13
    $region12: #{tpu_custom_call.1} parent=1 // pred_region
      _
    $region13: #{tpu_custom_call.1} parent=1 // pred_fallthru
      _
    // Predicated region
    $region14: #{tpu_custom_call.1} parent=1 // pred_check
      _
    $region15: #{tpu_custom_call.1} parent=1 // pred_check_branch
      %42 = sbr.rel (0) target = $region17
    $region16: #{tpu_custom_call.1} parent=1 // pred_region
      _
    $region17: #{tpu_custom_call.1} parent=1 // pred_fallthru
      _
    // Predicated region
    $region18: #{tpu_custom_call.1} parent=1 // pred_check
      _
    $region19: #{tpu_custom_call.1} parent=1 // pred_check_branch
      %44 = sbr.rel (0) target = $region21
    $region20: #{tpu_custom_call.1} parent=1 // pred_region
      %s46 = ssub.s32 3072, 3072
      %47 = vsyncadd [#allocation6], %s46
      %s48 = sshll.u32 [#allocation7], 4
      %s49 = int_to_ptr.vmem [resolvable:$true] %s48
      %54 = dma.hbm_to_vmem [thread:$0]  %s4, 3072, %s49, [#allocation6], 64, 64, 4
    $region21: #{tpu_custom_call.1} parent=1 // pred_fallthru
      _
    // Predicated region
    $region22: #{tpu_custom_call.1} parent=1 // pred_check
      _
    $region23: #{tpu_custom_call.1} parent=1 // pred_check_branch
      %56 = sbr.rel (0) target = $region25
    $region24: #{tpu_custom_call.1} parent=1 // pred_region
      _
    $region25: #{tpu_custom_call.1} parent=1 // pred_fallthru
      _
    // Predicated region
    $region26: #{tpu_custom_call.1} parent=1 // pred_check
      _
    $region27: #{tpu_custom_call.1} parent=1 // pred_check_branch
      %58 = sbr.rel (0) target = $region29
    $region28: #{tpu_custom_call.1} parent=1 // pred_region
      _
    $region29: #{tpu_custom_call.1} parent=1 // pred_fallthru
      _
    // Predicated region
    $region30: #{tpu_custom_call.1} parent=1 // pred_check
      _
    $region31: #{tpu_custom_call.1} parent=1 // pred_check_branch
      %60 = sbr.rel (0) target = $region33
    $region32: #{tpu_custom_call.1} parent=1 // pred_region
      %61 = dma.done [#allocation3], 512
    $region33: #{tpu_custom_call.1} parent=1 // pred_fallthru
      _
    // Predicated region
    $region34: #{tpu_custom_call.1} parent=1 // pred_check
      _
    $region35: #{tpu_custom_call.1} parent=1 // pred_check_branch
      %63 = sbr.rel (0) target = $region37
    $region36: #{tpu_custom_call.1} parent=1 // pred_region
      %64 = dma.done [#allocation6], 3072
    $region37: #{tpu_custom_call.1} parent=1 // pred_fallthru
      _
    // Predicated region
    $region38: #{tpu_custom_call.1} parent=1 // pred_check
      _
    $region39: #{tpu_custom_call.1} parent=1 // pred_check_branch
      %66 = sbr.rel (0) target = $region41
    $region40: #{tpu_custom_call.1} parent=1 // pred_region
      %67 = dma.done [#allocation6], 3072
    $region41: #{tpu_custom_call.1} parent=1 // pred_fallthru
      _
    %v71 = vld [vmem:[#allocation2] sm:$0xff]
    %v72 = vld [vmem:[#allocation2 + $0x8] sm:$0xff]
    %v73 = vld [vmem:[#allocation2 + $0x10] sm:$0xff]
    %v74 = vld [vmem:[#allocation2 + $0x18] sm:$0xff]
    %v75 = vlaneseq
    %v76 = vshrl.u32 %v75, 7
    %v77 = vadd.s32 %v76, 8
    %v78 = vadd.s32 %v76, 16
    %v79 = vadd.s32 %v76, 24
    %vm80 = vcmp.lt.s32.totalorder %v76, 0
    %v81 = vsub.s32 0, %v76
    %v82 = vsel %vm80, %v81, %v76
    %v83 = vshrl.u32 %v82, 4
    %v84 = vand.u32 %v82, 15
    %v85 = vsub.s32 0, %v84
    %v86 = vsel %vm80, %v85, %v84
    %vm87 = vcmp.lt.s32.totalorder %v77, 0
    %v88 = vsub.s32 0, %v77
    %v89 = vsel %vm87, %v88, %v77
    %v90 = vshrl.u32 %v89, 4
    %v91 = vand.u32 %v89, 15
    %v92 = vsub.s32 0, %v91
    %v93 = vsel %vm87, %v92, %v91
    %vm94 = vcmp.lt.s32.totalorder %v78, 0
    %v95 = vsub.s32 0, %v78
    %v96 = vsel %vm94, %v95, %v78
    %v97 = vshrl.u32 %v96, 4
    %v98 = vand.u32 %v96, 15
    %v99 = vsub.s32 0, %v98
    %v100 = vsel %vm94, %v99, %v98
    %vm101 = vcmp.lt.s32.totalorder %v79, 0
    %v102 = vsub.s32 0, %v79
    %v103 = vsel %vm101, %v102, %v79
    %v104 = vshrl.u32 %v103, 4
    %v105 = vand.u32 %v103, 15
    %v106 = vsub.s32 0, %v105
    %v107 = vsel %vm101, %v106, %v105
    %vm108 = vcmp.ne.s32.totalorder %v86, 0
    %vm109 = vcmp.ne.s32.totalorder %v93, 0
    %vm110 = vcmp.ne.s32.totalorder %v100, 0
    %vm111 = vcmp.ne.s32.totalorder %v107, 0
    %vm112 = vcmp.lt.s32.totalorder %v86, 0
    %vm113 = vcmp.lt.s32.totalorder %v93, 0
    %vm114 = vcmp.lt.s32.totalorder %v100, 0
    %vm115 = vcmp.lt.s32.totalorder %v107, 0
    %vm116 = vmand %vm112, %vm108
    %vm117 = vmand %vm113, %vm109
    %vm118 = vmand %vm114, %vm110
    %vm119 = vmand %vm115, %vm111
    %v120 = vadd.s32 %v86, 16
    %v121 = vadd.s32 %v93, 16
    %v122 = vadd.s32 %v100, 16
    %v123 = vadd.s32 %v107, 16
    %v124 = vsel %vm116, %v120, %v86
    %v125 = vsel %vm117, %v121, %v93
    %v126 = vsel %vm118, %v122, %v100
    %v127 = vsel %vm119, %v123, %v107
    %vm128 = vcmp.ne.s32.totalorder %v124, 0
    %vm129 = vcmp.ne.s32.totalorder %v125, 0
    %vm130 = vcmp.ne.s32.totalorder %v126, 0
    %vm131 = vcmp.ne.s32.totalorder %v127, 0
    %vm132 = vcmp.ne.s32.totalorder %v124, 15
    %vm133 = vcmp.ne.s32.totalorder %v125, 15
    %vm134 = vcmp.ne.s32.totalorder %v126, 15
    %vm135 = vcmp.ne.s32.totalorder %v127, 15
    %v136 = vpack.c.bf16 %v72, %v71
    %v137 = vpack.c.bf16 %v74, %v73
    %vm138 = vsmask.f32 256
    %v140 = vshrl.u32 %v136, 16
    %v142 = vrot.slane %v140, 7
    %v143 = vshll.u32 %v136, 16
    %v145 = vor.u32 %v142, %v143
    %v147 = vshrl.u32 %v137, 16
    %v149 = vrot.slane %v147, 7
    %v150 = vshll.u32 %v137, 16
    %v152 = vor.u32 %v149, %v150
    %v153 = vsel %vm138, %v142, %v152
    %vm156 = vcmask 1040384
    %vm157 = vmand %vm156, %vm138
    %v158 = vsel %vm157, 0, %v145
    %v159 = vsel %vm128, 1, 0
    %v160 = vsel %vm129, 1, 0
    %v161 = vsel %vm130, 1, 0
    %v162 = vsel %vm131, 1, 0
    %vm163 = vcmp.eq.s32.totalorder %v159, 1
    %vm164 = vcmp.eq.s32.totalorder %v160, 1
    %vm165 = vcmp.eq.s32.totalorder %v161, 1
    %vm166 = vcmp.eq.s32.totalorder %v162, 1
    %vm167 = vmpackc.low %vm163, %vm163
    %vm168 = vmpackc.low %vm164, %vm164
    %vm169 = vmpackc.low %vm165, %vm165
    %vm170 = vmpackc.low %vm166, %vm166
    %v171 = vsel %vm167, 65537, 0
    %v172 = vsel %vm168, 65537, 0
    %v173 = vsel %vm169, 65537, 0
    %v174 = vsel %vm170, 65537, 0
    %v175 = vunpack.c.l.b16 %v171
    %v176 = vunpack.c.l.b16 %v172
    %v177 = vunpack.c.l.b16 %v173
    %v178 = vunpack.c.l.b16 %v174
    %v179 = vpack.c.b16 %v176, %v175
    %v180 = vpack.c.b16 %v178, %v177
    %vm181 = vcmp.ne.s16.totalorder %v179, 0
    %vm182 = vcmp.ne.s16.totalorder %v180, 0
    %v183 = vsel %vm181, %v158, 0
    %v184 = vsel %vm182, %v153, 0
    %vm185 = vsmask.f32 7424
    %v186 = vrot.slane %v143, 1
    %v187 = vor.u32 %v140, %v186
    %v188 = vrot.slane %v150, 1
    %v189 = vsel %vm185, %v187, %v188
    %v190 = vor.u32 %v147, %v188
    %vm193 = vcmask 1047552
    %vm194 = vmand %vm193, %vm185
    %v195 = vsel %vm194, %v190, 0
    %v196 = vsel %vm132, 1, 0
    %v197 = vsel %vm133, 1, 0
    %v198 = vsel %vm134, 1, 0
    %v199 = vsel %vm135, 1, 0
    %vm200 = vcmp.eq.s32.totalorder %v196, 1
    %vm201 = vcmp.eq.s32.totalorder %v197, 1
    %vm202 = vcmp.eq.s32.totalorder %v198, 1
    %vm203 = vcmp.eq.s32.totalorder %v199, 1
    %vm204 = vmpackc.low %vm200, %vm200
    %vm205 = vmpackc.low %vm201, %vm201
    %vm206 = vmpackc.low %vm202, %vm202
    %vm207 = vmpackc.low %vm203, %vm203
    %v208 = vsel %vm204, 65537, 0
    %v209 = vsel %vm205, 65537, 0
    %v210 = vsel %vm206, 65537, 0
    %v211 = vsel %vm207, 65537, 0
    %v212 = vunpack.c.l.b16 %v208
    %v213 = vunpack.c.l.b16 %v209
    %v214 = vunpack.c.l.b16 %v210
    %v215 = vunpack.c.l.b16 %v211
    %v216 = vpack.c.b16 %v213, %v212
    %v217 = vpack.c.b16 %v215, %v214
    %vm218 = vcmp.ne.s16.totalorder %v216, 0
    %vm219 = vcmp.ne.s16.totalorder %v217, 0
    %v220 = vsel %vm218, %v189, 0
    %v221 = vsel %vm219, %v195, 0
    %v222 = vld [vmem:[#allocation5] sm:$0xf]
    %v223 = vld [vmem:[#allocation5 + $0x4] sm:$0xf]
    %v224 = vld [vmem:[#allocation5 + $0x8] sm:$0xf]
    %v225 = vld [vmem:[#allocation5 + $0xc] sm:$0xf]
    %v226 = vld [vmem:[#allocation5 + $0x10] sm:$0xf]
    %v227 = vld [vmem:[#allocation5 + $0x14] sm:$0xf]
    %v228 = vld [vmem:[#allocation5 + $0x18] sm:$0xf]
    %v229 = vld [vmem:[#allocation5 + $0x1c] sm:$0xf]
    %v230 = vld [vmem:[#allocation5 + $0x20] sm:$0xf]
    %v231 = vld [vmem:[#allocation5 + $0x24] sm:$0xf]
    %v232 = vld [vmem:[#allocation5 + $0x28] sm:$0xf]
    %v233 = vld [vmem:[#allocation5 + $0x2c] sm:$0xf]
    %v234 = vld [vmem:[#allocation5 + $0x30] sm:$0xf]
    %v235 = vld [vmem:[#allocation5 + $0x34] sm:$0xf]
    %v236 = vld [vmem:[#allocation5 + $0x38] sm:$0xf]
    %v237 = vld [vmem:[#allocation5 + $0x3c] sm:$0xf]
    %v238 = vld [vmem:[#allocation5 + $0x40] sm:$0xf]
    %v239 = vld [vmem:[#allocation5 + $0x44] sm:$0xf]
    %v240 = vld [vmem:[#allocation5 + $0x48] sm:$0xf]
    %v241 = vld [vmem:[#allocation5 + $0x4c] sm:$0xf]
    %v242 = vld [vmem:[#allocation5 + $0x50] sm:$0xf]
    %v243 = vld [vmem:[#allocation5 + $0x54] sm:$0xf]
    %v244 = vld [vmem:[#allocation5 + $0x58] sm:$0xf]
    %v245 = vld [vmem:[#allocation5 + $0x5c] sm:$0xf]
    %v246 = vld [vmem:[#allocation5 + $0x60] sm:$0xf]
    %v247 = vld [vmem:[#allocation5 + $0x64] sm:$0xf]
    %v248 = vld [vmem:[#allocation5 + $0x68] sm:$0xf]
    %v249 = vld [vmem:[#allocation5 + $0x6c] sm:$0xf]
    %v250 = vld [vmem:[#allocation5 + $0x70] sm:$0xf]
    %v251 = vld [vmem:[#allocation5 + $0x74] sm:$0xf]
    %v252 = vld [vmem:[#allocation5 + $0x78] sm:$0xf]
    %v253 = vld [vmem:[#allocation5 + $0x7c] sm:$0xf]
    %v254 = vld [vmem:[#allocation5 + $0x80] sm:$0xf]
    %v255 = vld [vmem:[#allocation5 + $0x84] sm:$0xf]
    %v256 = vld [vmem:[#allocation5 + $0x88] sm:$0xf]
    %v257 = vld [vmem:[#allocation5 + $0x8c] sm:$0xf]
    %v258 = vld [vmem:[#allocation5 + $0x90] sm:$0xf]
    %v259 = vld [vmem:[#allocation5 + $0x94] sm:$0xf]
    %v260 = vld [vmem:[#allocation5 + $0x98] sm:$0xf]
    %v261 = vld [vmem:[#allocation5 + $0x9c] sm:$0xf]
    %v262 = vld [vmem:[#allocation5 + $0xa0] sm:$0xf]
    %v263 = vld [vmem:[#allocation5 + $0xa4] sm:$0xf]
    %v264 = vld [vmem:[#allocation5 + $0xa8] sm:$0xf]
    %v265 = vld [vmem:[#allocation5 + $0xac] sm:$0xf]
    %v266 = vld [vmem:[#allocation5 + $0xb0] sm:$0xf]
    %v267 = vld [vmem:[#allocation5 + $0xb4] sm:$0xf]
    %v268 = vld [vmem:[#allocation5 + $0xb8] sm:$0xf]
    %v269 = vld [vmem:[#allocation5 + $0xbc] sm:$0xf]
    %v318 = vunpack.c.l.b16 %v222
    %v319 = vunpack.c.l.b16 %v223
    %v320 = vunpack.c.l.b16 %v224
    %v321 = vunpack.c.l.b16 %v225
    %v322 = vunpack.c.l.b16 %v226
    %v323 = vunpack.c.l.b16 %v227
    %v324 = vunpack.c.l.b16 %v228
    %v325 = vunpack.c.l.b16 %v229
    %v326 = vunpack.c.l.b16 %v230
    %v327 = vunpack.c.l.b16 %v231
    %v328 = vunpack.c.l.b16 %v232
    %v329 = vunpack.c.l.b16 %v233
    %v330 = vunpack.c.l.b16 %v234
    %v331 = vunpack.c.l.b16 %v235
    %v332 = vunpack.c.l.b16 %v236
    %v333 = vunpack.c.l.b16 %v237
    %v334 = vunpack.c.l.b16 %v238
    %v335 = vunpack.c.l.b16 %v239
    %v336 = vunpack.c.l.b16 %v240
    %v337 = vunpack.c.l.b16 %v241
    %v338 = vunpack.c.l.b16 %v242
    %v339 = vunpack.c.l.b16 %v243
    %v340 = vunpack.c.l.b16 %v244
    %v341 = vunpack.c.l.b16 %v245
    %v342 = vunpack.c.l.b16 %v246
    %v343 = vunpack.c.l.b16 %v247
    %v344 = vunpack.c.l.b16 %v248
    %v345 = vunpack.c.l.b16 %v249
    %v346 = vunpack.c.l.b16 %v250
    %v347 = vunpack.c.l.b16 %v251
    %v348 = vunpack.c.l.b16 %v252
    %v349 = vunpack.c.l.b16 %v253
    %v350 = vunpack.c.l.b16 %v254
    %v351 = vunpack.c.l.b16 %v255
    %v352 = vunpack.c.l.b16 %v256
    %v353 = vunpack.c.l.b16 %v257
    %v354 = vunpack.c.l.b16 %v258
    %v355 = vunpack.c.l.b16 %v259
    %v356 = vunpack.c.l.b16 %v260
    %v357 = vunpack.c.l.b16 %v261
    %v358 = vunpack.c.l.b16 %v262
    %v359 = vunpack.c.l.b16 %v263
    %v360 = vunpack.c.l.b16 %v264
    %v361 = vunpack.c.l.b16 %v265
    %v362 = vunpack.c.l.b16 %v266
    %v363 = vunpack.c.l.b16 %v267
    %v364 = vunpack.c.l.b16 %v268
    %v365 = vunpack.c.l.b16 %v269
    %v366 = vpack.c.b16 %v319, %v318
    %v367 = vpack.c.b16 %v321, %v320
    %v368 = vpack.c.b16 %v323, %v322
    %v369 = vpack.c.b16 %v325, %v324
    %v370 = vpack.c.b16 %v327, %v326
    %v371 = vpack.c.b16 %v329, %v328
    %v372 = vpack.c.b16 %v331, %v330
    %v373 = vpack.c.b16 %v333, %v332
    %v374 = vpack.c.b16 %v335, %v334
    %v375 = vpack.c.b16 %v337, %v336
    %v376 = vpack.c.b16 %v339, %v338
    %v377 = vpack.c.b16 %v341, %v340
    %v378 = vpack.c.b16 %v343, %v342
    %v379 = vpack.c.b16 %v345, %v344
    %v380 = vpack.c.b16 %v347, %v346
    %v381 = vpack.c.b16 %v349, %v348
    %v382 = vpack.c.b16 %v351, %v350
    %v383 = vpack.c.b16 %v353, %v352
    %v384 = vpack.c.b16 %v355, %v354
    %v385 = vpack.c.b16 %v357, %v356
    %v386 = vpack.c.b16 %v359, %v358
    %v387 = vpack.c.b16 %v361, %v360
    %v388 = vpack.c.b16 %v363, %v362
    %v389 = vpack.c.b16 %v365, %v364
    %414 = vmatprep.subr.bf16.mxu0 0
    %415 = vmatpush1.bf16.msra.mxu0 %v366
    %416 = vmatprep.subr.bf16.mxu0 0
    %417 = vmatpush1.bf16.msra.mxu0 %v367
    %418 = vmatprep.subr.bf16.mxu0 0
    %419 = vmatpush1.bf16.msra.mxu0 %v368
    %420 = vmatprep.subr.bf16.mxu0 0
    %421 = vmatpush1.bf16.msra.mxu0 %v369
    %422 = vmatprep.subr.bf16.mxu0 0
    %423 = vmatpush1.bf16.msra.mxu0 %v370
    %424 = vmatprep.subr.bf16.mxu0 0
    %425 = vmatpush1.bf16.msra.mxu0 %v371
    %426 = vmatprep.subr.bf16.mxu0 0
    %427 = vmatpush1.bf16.msra.mxu0 %v372
    %428 = vmatprep.subr.bf16.mxu0 0
    %429 = vmatpush1.bf16.msra.mxu0 %v373
    %430 = vmatprep.subr.bf16.mxu0 0
    %431 = vmatpush1.bf16.msra.mxu0 %v374
    %432 = vmatprep.subr.bf16.mxu0 0
    %433 = vmatpush1.bf16.msra.mxu0 %v375
    %434 = vmatprep.subr.bf16.mxu0 0
    %435 = vmatpush1.bf16.msra.mxu0 %v376
    %436 = vmatprep.subr.bf16.mxu0 0
    %437 = vmatpush1.bf16.msra.mxu0 %v377
    %438 = vmatprep.subr.bf16.mxu0 0
    %439 = vmatpush1.bf16.msra.mxu0 %v378
    %440 = vmatprep.subr.bf16.mxu0 0
    %441 = vmatpush1.bf16.msra.mxu0 %v379
    %442 = vmatprep.subr.bf16.mxu0 0
    %443 = vmatpush1.bf16.msra.mxu0 %v380
    %444 = vmatprep.subr.bf16.mxu0 0
    %445 = vmatpush1.bf16.msra.mxu0 %v381
    %446 = vmatprep.mubr.bf16.mxu0 %v136
    %447 = vmatmul.mubr.bf16.gmra.mrb[0].mxu0 %v183
    %v448 = vpop.f32.mrb[0].mxu0
    %v449 = vadd.f32 0.0, %v448
    %v450 = vpop.f32.mrb[0].mxu0
    %v451 = vpop.f32.mrb[0].mxu0
    %v452 = vadd.f32 0.0, %v451
    %v453 = vpop.f32.mrb[0].mxu0
    %454 = vmatprep.mubr.bf16.mxu0 %v137
    %455 = vmatmul.mubr.bf16.gmra.mrb[0].mxu0 %v184
    %v456 = vpop.f32.mrb[0].mxu0
    %v457 = vadd.f32 0.0, %v456
    %v458 = vpop.f32.mrb[0].mxu0
    %v459 = vpop.f32.mrb[0].mxu0
    %v460 = vadd.f32 0.0, %v459
    %v461 = vpop.f32.mrb[0].mxu0
    %462 = vdwg.mxu0
    %463 = vmatprep.subr.bf16.mxu0 0
    %464 = vmatpush1.bf16.msra.mxu0 %v382
    %465 = vmatprep.subr.bf16.mxu0 0
    %466 = vmatpush1.bf16.msra.mxu0 %v383
    %467 = vmatprep.subr.bf16.mxu0 0
    %468 = vmatpush1.bf16.msra.mxu0 %v384
    %469 = vmatprep.subr.bf16.mxu0 0
    %470 = vmatpush1.bf16.msra.mxu0 %v385
    %471 = vmatprep.subr.bf16.mxu0 0
    %472 = vmatpush1.bf16.msra.mxu0 %v386
    %473 = vmatprep.subr.bf16.mxu0 0
    %474 = vmatpush1.bf16.msra.mxu0 %v387
    %475 = vmatprep.subr.bf16.mxu0 0
    %476 = vmatpush1.bf16.msra.mxu0 %v388
    %477 = vmatprep.subr.bf16.mxu0 0
    %478 = vmatpush1.bf16.msra.mxu0 %v389
    %479 = vmatprep.subr.bf16.mxu0 0
    %480 = vmatpush1.bf16.msra.mxu0 0
    %481 = vmatprep.subr.bf16.mxu0 0
    %482 = vmatpush1.bf16.msra.mxu0 0
    %483 = vmatprep.subr.bf16.mxu0 0
    %484 = vmatpush1.bf16.msra.mxu0 0
    %485 = vmatprep.subr.bf16.mxu0 0
    %486 = vmatpush1.bf16.msra.mxu0 0
    %487 = vmatprep.subr.bf16.mxu0 0
    %488 = vmatpush1.bf16.msra.mxu0 0
    %489 = vmatprep.subr.bf16.mxu0 0
    %490 = vmatpush1.bf16.msra.mxu0 0
    %491 = vmatprep.subr.bf16.mxu0 0
    %492 = vmatpush1.bf16.msra.mxu0 0
    %493 = vmatprep.subr.bf16.mxu0 0
    %494 = vmatpush1.bf16.msra.mxu0 0
    %495 = vmatprep.mubr.bf16.mxu0 0
    %496 = vmatmul.mubr.bf16.gmra.mrb[0].mxu0 %v220
    %v497 = vpop.f32.mrb[0].mxu0
    %v498 = vadd.f32 %v449, %v497
    %v499 = vpop.f32.mrb[0].mxu0
    %v500 = vpop.f32.mrb[0].mxu0
    %v501 = vadd.f32 %v452, %v500
    %v502 = vpop.f32.mrb[0].mxu0
    %503 = vmatprep.mubr.bf16.mxu0 0
    %504 = vmatmul.mubr.bf16.gmra.mrb[0].mxu0 %v221
    %v505 = vpop.f32.mrb[0].mxu0
    %v506 = vadd.f32 %v457, %v505
    %v507 = vpop.f32.mrb[0].mxu0
    %v508 = vpop.f32.mrb[0].mxu0
    %v509 = vadd.f32 %v460, %v508
    %v510 = vpop.f32.mrb[0].mxu0
    %511 = vdwg.mxu0
    %v512 = vld [vmem:[%s2] sm:$0x1]
    %v514 = vlaneseq
    %v515 = vshrl.u32 %v514, 7
    %v516 = vsub.s32 0, %v515
    %v517 = vrot.slane %v512, %v516
    %v519 = vmul.f32 %v498, %v517
    %v520 = vmul.f32 %v501, %v517
    %v521 = vmul.f32 %v506, %v517
    %v522 = vmul.f32 %v509, %v517
    %v523 = vld [vmem:[%s3] sm:$0x1]
    %v525 = vlaneseq
    %v526 = vshrl.u32 %v525, 7
    %v527 = vsub.s32 0, %v526
    %v528 = vrot.slane %v523, %v527
    %v530 = vadd.f32 %v519, %v528
    %v531 = vadd.f32 %v520, %v528
    %v532 = vadd.f32 %v521, %v528
    %v533 = vadd.f32 %v522, %v528
    %v534 = vmax.f32 %v530, 0.0
    %v535 = vmax.f32 %v531, 0.0
    %v536 = vmax.f32 %v532, 0.0
    %v537 = vmax.f32 %v533, 0.0
    %v538 = vpack.c.bf16 %v535, %v534
    %v539 = vpack.c.bf16 %v537, %v536
    %v541 = vshrl.u32 %v538, 16
    %v543 = vrot.slane %v541, 7
    %v544 = vshll.u32 %v538, 16
    %v546 = vor.u32 %v543, %v544
    %v548 = vshrl.u32 %v539, 16
    %v550 = vrot.slane %v548, 7
    %v551 = vshll.u32 %v539, 16
    %v553 = vor.u32 %v550, %v551
    %v554 = vsel %vm138, %v543, %v553
    %v557 = vsel %vm157, 0, %v546
    %v558 = vsel %vm181, %v557, 0
    %v559 = vsel %vm182, %v554, 0
    %v560 = vrot.slane %v544, 1
    %v561 = vor.u32 %v541, %v560
    %v562 = vrot.slane %v551, 1
    %v563 = vsel %vm185, %v561, %v562
    %v564 = vor.u32 %v548, %v562
    %v567 = vsel %vm194, %v564, 0
    %v568 = vsel %vm218, %v563, 0
    %v569 = vsel %vm219, %v567, 0
    %v570 = vld [vmem:[#allocation7] sm:$0xf]
    %v571 = vld [vmem:[#allocation7 + $0x4] sm:$0xf]
    %v572 = vld [vmem:[#allocation7 + $0x8] sm:$0xf]
    %v573 = vld [vmem:[#allocation7 + $0xc] sm:$0xf]
    %v574 = vld [vmem:[#allocation7 + $0x10] sm:$0xf]
    %v575 = vld [vmem:[#allocation7 + $0x14] sm:$0xf]
    %v576 = vld [vmem:[#allocation7 + $0x18] sm:$0xf]
    %v577 = vld [vmem:[#allocation7 + $0x1c] sm:$0xf]
    %v578 = vld [vmem:[#allocation7 + $0x20] sm:$0xf]
    %v579 = vld [vmem:[#allocation7 + $0x24] sm:$0xf]
    %v580 = vld [vmem:[#allocation7 + $0x28] sm:$0xf]
    %v581 = vld [vmem:[#allocation7 + $0x2c] sm:$0xf]
    %v582 = vld [vmem:[#allocation7 + $0x30] sm:$0xf]
    %v583 = vld [vmem:[#allocation7 + $0x34] sm:$0xf]
    %v584 = vld [vmem:[#allocation7 + $0x38] sm:$0xf]
    %v585 = vld [vmem:[#allocation7 + $0x3c] sm:$0xf]
    %v586 = vld [vmem:[#allocation7 + $0x40] sm:$0xf]
    %v587 = vld [vmem:[#allocation7 + $0x44] sm:$0xf]
    %v588 = vld [vmem:[#allocation7 + $0x48] sm:$0xf]
    %v589 = vld [vmem:[#allocation7 + $0x4c] sm:$0xf]
    %v590 = vld [vmem:[#allocation7 + $0x50] sm:$0xf]
    %v591 = vld [vmem:[#allocation7 + $0x54] sm:$0xf]
    %v592 = vld [vmem:[#allocation7 + $0x58] sm:$0xf]
    %v593 = vld [vmem:[#allocation7 + $0x5c] sm:$0xf]
    %v594 = vld [vmem:[#allocation7 + $0x60] sm:$0xf]
    %v595 = vld [vmem:[#allocation7 + $0x64] sm:$0xf]
    %v596 = vld [vmem:[#allocation7 + $0x68] sm:$0xf]
    %v597 = vld [vmem:[#allocation7 + $0x6c] sm:$0xf]
    %v598 = vld [vmem:[#allocation7 + $0x70] sm:$0xf]
    %v599 = vld [vmem:[#allocation7 + $0x74] sm:$0xf]
    %v600 = vld [vmem:[#allocation7 + $0x78] sm:$0xf]
    %v601 = vld [vmem:[#allocation7 + $0x7c] sm:$0xf]
    %v602 = vld [vmem:[#allocation7 + $0x80] sm:$0xf]
    %v603 = vld [vmem:[#allocation7 + $0x84] sm:$0xf]
    %v604 = vld [vmem:[#allocation7 + $0x88] sm:$0xf]
    %v605 = vld [vmem:[#allocation7 + $0x8c] sm:$0xf]
    %v606 = vld [vmem:[#allocation7 + $0x90] sm:$0xf]
    %v607 = vld [vmem:[#allocation7 + $0x94] sm:$0xf]
    %v608 = vld [vmem:[#allocation7 + $0x98] sm:$0xf]
    %v609 = vld [vmem:[#allocation7 + $0x9c] sm:$0xf]
    %v610 = vld [vmem:[#allocation7 + $0xa0] sm:$0xf]
    %v611 = vld [vmem:[#allocation7 + $0xa4] sm:$0xf]
    %v612 = vld [vmem:[#allocation7 + $0xa8] sm:$0xf]
    %v613 = vld [vmem:[#allocation7 + $0xac] sm:$0xf]
    %v614 = vld [vmem:[#allocation7 + $0xb0] sm:$0xf]
    %v615 = vld [vmem:[#allocation7 + $0xb4] sm:$0xf]
    %v616 = vld [vmem:[#allocation7 + $0xb8] sm:$0xf]
    %v617 = vld [vmem:[#allocation7 + $0xbc] sm:$0xf]
    %v666 = vunpack.c.l.b16 %v570
    %v667 = vunpack.c.l.b16 %v571
    %v668 = vunpack.c.l.b16 %v572
    %v669 = vunpack.c.l.b16 %v573
    %v670 = vunpack.c.l.b16 %v574
    %v671 = vunpack.c.l.b16 %v575
    %v672 = vunpack.c.l.b16 %v576
    %v673 = vunpack.c.l.b16 %v577
    %v674 = vunpack.c.l.b16 %v578
    %v675 = vunpack.c.l.b16 %v579
    %v676 = vunpack.c.l.b16 %v580
    %v677 = vunpack.c.l.b16 %v581
    %v678 = vunpack.c.l.b16 %v582
    %v679 = vunpack.c.l.b16 %v583
    %v680 = vunpack.c.l.b16 %v584
    %v681 = vunpack.c.l.b16 %v585
    %v682 = vunpack.c.l.b16 %v586
    %v683 = vunpack.c.l.b16 %v587
    %v684 = vunpack.c.l.b16 %v588
    %v685 = vunpack.c.l.b16 %v589
    %v686 = vunpack.c.l.b16 %v590
    %v687 = vunpack.c.l.b16 %v591
    %v688 = vunpack.c.l.b16 %v592
    %v689 = vunpack.c.l.b16 %v593
    %v690 = vunpack.c.l.b16 %v594
    %v691 = vunpack.c.l.b16 %v595
    %v692 = vunpack.c.l.b16 %v596
    %v693 = vunpack.c.l.b16 %v597
    %v694 = vunpack.c.l.b16 %v598
    %v695 = vunpack.c.l.b16 %v599
    %v696 = vunpack.c.l.b16 %v600
    %v697 = vunpack.c.l.b16 %v601
    %v698 = vunpack.c.l.b16 %v602
    %v699 = vunpack.c.l.b16 %v603
    %v700 = vunpack.c.l.b16 %v604
    %v701 = vunpack.c.l.b16 %v605
    %v702 = vunpack.c.l.b16 %v606
    %v703 = vunpack.c.l.b16 %v607
    %v704 = vunpack.c.l.b16 %v608
    %v705 = vunpack.c.l.b16 %v609
    %v706 = vunpack.c.l.b16 %v610
    %v707 = vunpack.c.l.b16 %v611
    %v708 = vunpack.c.l.b16 %v612
    %v709 = vunpack.c.l.b16 %v613
    %v710 = vunpack.c.l.b16 %v614
    %v711 = vunpack.c.l.b16 %v615
    %v712 = vunpack.c.l.b16 %v616
    %v713 = vunpack.c.l.b16 %v617
    %v714 = vpack.c.b16 %v667, %v666
    %v715 = vpack.c.b16 %v669, %v668
    %v716 = vpack.c.b16 %v671, %v670
    %v717 = vpack.c.b16 %v673, %v672
    %v718 = vpack.c.b16 %v675, %v674
    %v719 = vpack.c.b16 %v677, %v676
    %v720 = vpack.c.b16 %v679, %v678
    %v721 = vpack.c.b16 %v681, %v680
    %v722 = vpack.c.b16 %v683, %v682
    %v723 = vpack.c.b16 %v685, %v684
    %v724 = vpack.c.b16 %v687, %v686
    %v725 = vpack.c.b16 %v689, %v688
    %v726 = vpack.c.b16 %v691, %v690
    %v727 = vpack.c.b16 %v693, %v692
    %v728 = vpack.c.b16 %v695, %v694
    %v729 = vpack.c.b16 %v697, %v696
    %v730 = vpack.c.b16 %v699, %v698
    %v731 = vpack.c.b16 %v701, %v700
    %v732 = vpack.c.b16 %v703, %v702
    %v733 = vpack.c.b16 %v705, %v704
    %v734 = vpack.c.b16 %v707, %v706
    %v735 = vpack.c.b16 %v709, %v708
    %v736 = vpack.c.b16 %v711, %v710
    %v737 = vpack.c.b16 %v713, %v712
    %762 = vmatprep.subr.bf16.mxu0 0
    %763 = vmatpush1.bf16.msra.mxu0 %v714
    %764 = vmatprep.subr.bf16.mxu0 0
    %765 = vmatpush1.bf16.msra.mxu0 %v715
    %766 = vmatprep.subr.bf16.mxu0 0
    %767 = vmatpush1.bf16.msra.mxu0 %v716
    %768 = vmatprep.subr.bf16.mxu0 0
    %769 = vmatpush1.bf16.msra.mxu0 %v717
    %770 = vmatprep.subr.bf16.mxu0 0
    %771 = vmatpush1.bf16.msra.mxu0 %v718
    %772 = vmatprep.subr.bf16.mxu0 0
    %773 = vmatpush1.bf16.msra.mxu0 %v719
    %774 = vmatprep.subr.bf16.mxu0 0
    %775 = vmatpush1.bf16.msra.mxu0 %v720
    %776 = vmatprep.subr.bf16.mxu0 0
    %777 = vmatpush1.bf16.msra.mxu0 %v721
    %778 = vmatprep.subr.bf16.mxu0 0
    %779 = vmatpush1.bf16.msra.mxu0 %v722
    %780 = vmatprep.subr.bf16.mxu0 0
    %781 = vmatpush1.bf16.msra.mxu0 %v723
    %782 = vmatprep.subr.bf16.mxu0 0
    %783 = vmatpush1.bf16.msra.mxu0 %v724
    %784 = vmatprep.subr.bf16.mxu0 0
    %785 = vmatpush1.bf16.msra.mxu0 %v725
    %786 = vmatprep.subr.bf16.mxu0 0
    %787 = vmatpush1.bf16.msra.mxu0 %v726
    %788 = vmatprep.subr.bf16.mxu0 0
    %789 = vmatpush1.bf16.msra.mxu0 %v727
    %790 = vmatprep.subr.bf16.mxu0 0
    %791 = vmatpush1.bf16.msra.mxu0 %v728
    %792 = vmatprep.subr.bf16.mxu0 0
    %793 = vmatpush1.bf16.msra.mxu0 %v729
    %794 = vmatprep.mubr.bf16.mxu0 %v538
    %795 = vmatmul.mubr.bf16.gmra.mrb[0].mxu0 %v558
    %v796 = vpop.f32.mrb[0].mxu0
    %v797 = vadd.f32 0.0, %v796
    %v798 = vpop.f32.mrb[0].mxu0
    %v799 = vpop.f32.mrb[0].mxu0
    %v800 = vadd.f32 0.0, %v799
    %v801 = vpop.f32.mrb[0].mxu0
    %802 = vmatprep.mubr.bf16.mxu0 %v539
    %803 = vmatmul.mubr.bf16.gmra.mrb[0].mxu0 %v559
    %v804 = vpop.f32.mrb[0].mxu0
    %v805 = vadd.f32 0.0, %v804
    %v806 = vpop.f32.mrb[0].mxu0
    %v807 = vpop.f32.mrb[0].mxu0
    %v808 = vadd.f32 0.0, %v807
    %v809 = vpop.f32.mrb[0].mxu0
    %810 = vdwg.mxu0
    %811 = vmatprep.subr.bf16.mxu0 0
    %812 = vmatpush1.bf16.msra.mxu0 %v730
    %813 = vmatprep.subr.bf16.mxu0 0
    %814 = vmatpush1.bf16.msra.mxu0 %v731
    %815 = vmatprep.subr.bf16.mxu0 0
    %816 = vmatpush1.bf16.msra.mxu0 %v732
    %817 = vmatprep.subr.bf16.mxu0 0
    %818 = vmatpush1.bf16.msra.mxu0 %v733
    %819 = vmatprep.subr.bf16.mxu0 0
    %820 = vmatpush1.bf16.msra.mxu0 %v734
    %821 = vmatprep.subr.bf16.mxu0 0
    %822 = vmatpush1.bf16.msra.mxu0 %v735
    %823 = vmatprep.subr.bf16.mxu0 0
    %824 = vmatpush1.bf16.msra.mxu0 %v736
    %825 = vmatprep.subr.bf16.mxu0 0
    %826 = vmatpush1.bf16.msra.mxu0 %v737
    %827 = vmatprep.subr.bf16.mxu0 0
    %828 = vmatpush1.bf16.msra.mxu0 0
    %829 = vmatprep.subr.bf16.mxu0 0
    %830 = vmatpush1.bf16.msra.mxu0 0
    %831 = vmatprep.subr.bf16.mxu0 0
    %832 = vmatpush1.bf16.msra.mxu0 0
    %833 = vmatprep.subr.bf16.mxu0 0
    %834 = vmatpush1.bf16.msra.mxu0 0
    %835 = vmatprep.subr.bf16.mxu0 0
    %836 = vmatpush1.bf16.msra.mxu0 0
    %837 = vmatprep.subr.bf16.mxu0 0
    %838 = vmatpush1.bf16.msra.mxu0 0
    %839 = vmatprep.subr.bf16.mxu0 0
    %840 = vmatpush1.bf16.msra.mxu0 0
    %841 = vmatprep.subr.bf16.mxu0 0
    %842 = vmatpush1.bf16.msra.mxu0 0
    %843 = vmatprep.mubr.bf16.mxu0 0
    %844 = vmatmul.mubr.bf16.gmra.mrb[0].mxu0 %v568
    %v845 = vpop.f32.mrb[0].mxu0
    %v846 = vadd.f32 %v797, %v845
    %v847 = vpop.f32.mrb[0].mxu0
    %v848 = vpop.f32.mrb[0].mxu0
    %v849 = vadd.f32 %v800, %v848
    %v850 = vpop.f32.mrb[0].mxu0
    %851 = vmatprep.mubr.bf16.mxu0 0
    %852 = vmatmul.mubr.bf16.gmra.mrb[0].mxu0 %v569
    %v853 = vpop.f32.mrb[0].mxu0
    %v854 = vadd.f32 %v805, %v853
    %v855 = vpop.f32.mrb[0].mxu0
    %v856 = vpop.f32.mrb[0].mxu0
    %v857 = vadd.f32 %v808, %v856
    %v858 = vpop.f32.mrb[0].mxu0
    %859 = vdwg.mxu0
    %v860 = vld [vmem:[%s5] sm:$0x1]
    %v862 = vlaneseq
    %v863 = vshrl.u32 %v862, 7
    %v864 = vsub.s32 0, %v863
    %v865 = vrot.slane %v860, %v864
    %v867 = vmul.f32 %v846, %v865
    %v868 = vmul.f32 %v849, %v865
    %v869 = vmul.f32 %v854, %v865
    %v870 = vmul.f32 %v857, %v865
    %v871 = vld [vmem:[%s6] sm:$0x1]
    %v873 = vlaneseq
    %v874 = vshrl.u32 %v873, 7
    %v875 = vsub.s32 0, %v874
    %v876 = vrot.slane %v871, %v875
    %v878 = vadd.f32 %v867, %v876
    %v879 = vadd.f32 %v868, %v876
    %v880 = vadd.f32 %v869, %v876
    %v881 = vadd.f32 %v870, %v876
    %v882 = vadd.f32 %v878, %v71
    %v883 = vadd.f32 %v879, %v72
    %v884 = vadd.f32 %v880, %v73
    %v885 = vadd.f32 %v881, %v74
    %v886 = vmax.f32 %v882, 0.0
    %v887 = vmax.f32 %v883, 0.0
    %v888 = vmax.f32 %v884, 0.0
    %v889 = vmax.f32 %v885, 0.0
    %890 = vst [vmem:[#allocation8] sm:$0xff] %v886
    %891 = vst [vmem:[#allocation8 + $0x8] sm:$0xff] %v887
    %892 = vst [vmem:[#allocation8 + $0x10] sm:$0xff] %v888
    %893 = vst [vmem:[#allocation8 + $0x18] sm:$0xff] %v889
    // Predicated region
    $region42: #{tpu_custom_call.1} parent=1 // pred_check
      _
    $region43: #{tpu_custom_call.1} parent=1 // pred_check_branch
      %895 = sbr.rel (0) target = $region45
    $region44: #{tpu_custom_call.1} parent=1 // pred_region
      %s897 = ssub.s32 512, 512
      %898 = vsyncadd [#allocation4], %s897
      %s899 = sshll.u32 [#allocation8], 4
      %s900 = int_to_ptr.vmem [resolvable:$true] %s899
      %905 = dma.vmem_to_hbm [thread:$0]  %s900, 512, %s7, [#allocation4], 128, 128, 8
    $region45: #{tpu_custom_call.1} parent=1 // pred_fallthru
      _
    // Predicated region
    $region46: #{tpu_custom_call.1} parent=1 // pred_check
      _
    $region47: #{tpu_custom_call.1} parent=1 // pred_check_branch
      %907 = sbr.rel (0) target = $region49
    $region48: #{tpu_custom_call.1} parent=1 // pred_region
      %908 = dma.done [#allocation4], 512
    $region49: #{tpu_custom_call.1} parent=1 // pred_fallthru
      _
    %909 = vsyncpa [#allocation3], 1
    %910 = vsyncpa [#allocation6], 1
    %911 = vsyncpa [#allocation4], 1

</llo_original>
